<compile_context>
chip_gen: v7x
topology: tpu7x:2x2x1
jax: 0.10.0
libtpu: 0.0.40
codegen_flags: <defaults>
</compile_context>

<pallas_src>
import jax
import jax.numpy as jnp
from jax import lax
from jax.experimental import pallas as pl
from jax.experimental.pallas import tpu as pltpu


_LANE = 128
_TM_MAX = 2048   # max feature-tile width (lanes)


def _round_up(x, m):
    return (x + m - 1) // m * m


def _vmem_params():
    """(resident-block VMEM budget, scoped vmem_limit_bytes), generation-aware."""
    cap = None
    try:
        cap = getattr(pltpu.get_tpu_info(), "vmem_capacity_bytes", None)
    except Exception:
        cap = None
    if cap is not None and cap >= 100 * 1024 * 1024:
        # v5e / v6e: 128 MiB physical VMEM -> bigger resident blocks, fewer grid steps.
        return 48 * 1024 * 1024, 100 * 1024 * 1024
    # v7x (64 MiB per TensorCore) or unknown: conservative envelope.
    return 16 * 1024 * 1024, 48 * 1024 * 1024


def _choose_tm(m):
    """Lane-dense feature-tile width TM (multiple of 128).

    The last tile may be ragged (masked in-kernel for pass 1), so no HBM-level
    padding is ever needed.
    """
    m_pad = _round_up(m, _LANE)
    if m_pad <= _TM_MAX:
        return m_pad
    # Largest multiple of 128 <= _TM_MAX that divides m_pad keeps every tile full.
    for tm in range(_TM_MAX, 0, -_LANE):
        if m_pad % tm == 0:
            if tm >= 512:
                return tm
            break
    # No large exact divisor: use the max tile width and a masked ragged last tile.
    return _TM_MAX


def _choose_tb(b, h, tm, itemsize, vmem_budget):
    """Batch elements per grid step.

    Bounded by the VMEM budget (two (TB,H,TM) blocks, double-buffered); prefers an
    even number (>=2) of batch grid steps so pass 1's only parallel axis splits
    evenly across v7x's two TensorCores.
    """
    per_batch = 4 * h * tm * itemsize
    tb_cap = int(max(1, min(vmem_budget // per_batch, b)))
    divisors = [t for t in range(1, b + 1) if b % t == 0 and t <= tb_cap]
    if b >= 2:
        for tb in sorted(divisors, reverse=True):
            if (b // tb) % 2 == 0:
                return tb
        for tb in sorted(divisors, reverse=True):
            if (b // tb) >= 2:
                return tb
    return max(divisors)


# --------------------------------------------------------------------------------------
# Pass 1: attention = softmax(x @ x_t^T), scores K-accumulated over M tiles in f32
# scratch; softmax finalize + single attention write at the last M step.
# --------------------------------------------------------------------------------------
def _make_scores_softmax_kernel(rem):
    """rem = M % TM (0 if the last tile is full). Static: mask code only emitted
    when needed."""

    def kernel(x_ref, xt_ref, att_ref, acc_ref):
        k = pl.program_id(1)
        n_m = pl.num_programs(1)

        @pl.when(k == 0)
        def _init():
            acc_ref[...] = jnp.zeros_like(acc_ref)

        def accumulate(x, xt):
            # scores[b, h, h'] += sum_m x[b, h, m] * xt[b, h', m]  (no transpose)
            acc_ref[...] += lax.dot_general(
                x, xt,
                dimension_numbers=(((2,), (2,)), ((0,), (0,))),
                preferred_element_type=jnp.float32,
            )

        if rem:
            # Ragged last tile: lanes >= rem hold stale VMEM data -> zero them.
            @pl.when(k == n_m - 1)
            def _masked():
                lane = lax.broadcasted_iota(jnp.int32, x_ref.shape, 2)
                valid = lane < rem
                x = x_ref[...]
                xt = xt_ref[...]
                accumulate(jnp.where(valid, x, jnp.zeros_like(x)),
                           jnp.where(valid, xt, jnp.zeros_like(xt)))

            @pl.when(k < n_m - 1)
            def _full():
                accumulate(x_ref[...], xt_ref[...])
        else:
            accumulate(x_ref[...], xt_ref[...])

        @pl.when(k == n_m - 1)
        def _finalize():
            s = acc_ref[...]                                   # (TB, H, H) f32
            m = jnp.max(s, axis=-1, keepdims=True)
            p = jnp.exp(s - m)
            denom = jnp.sum(p, axis=-1, keepdims=True)
            att_ref[...] = (p / denom).astype(att_ref.dtype)   # exact divide (cheap)

    return kernel


# --------------------------------------------------------------------------------------
# Pass 2: out = attention @ g, tiled over M with lane-dense (TB, H, TM) blocks.
# Ragged last tile needs no mask: garbage g columns only feed output columns whose
# stores fall outside the array and are discarded by the pipeline.
# --------------------------------------------------------------------------------------
def _apply_attention_kernel(att_ref, g_ref, o_ref):
    g = g_ref[...]                                             # (TB, H, TM)
    out = lax.dot_general(
        att_ref[...].astype(g.dtype), g,
        dimension_numbers=(((2,), (1,)), ((0,), (0,))),
        preferred_element_type=jnp.float32,
    )
    o_ref[...] = out.astype(o_ref.dtype)


def sa_coronal_block_flat(x_flat, xt_flat, g_flat, *, out_dtype=None):
    """Flattened entry point: (B, H, M) inputs -> (B, H, M) output (no layout glue,
    no HBM-level padding)."""
    B, H, M = x_flat.shape
    out_dtype = out_dtype if out_dtype is not None else x_flat.dtype
    itemsize = jnp.dtype(x_flat.dtype).itemsize

    vmem_budget, vmem_limit = _vmem_params()
    TM = _choose_tm(M)
    TB = _choose_tb(B, H, TM, itemsize, vmem_budget)

    n_b = B // TB
    n_m = pl.cdiv(M, TM)
    rem = M % TM

    # Keep attention in the compute dtype when it is a 16-bit float so pass 2 does
    # not re-cast it per M tile; otherwise f32.
    att_dtype = x_flat.dtype if jnp.dtype(x_flat.dtype).itemsize <= 2 else jnp.float32

    att = pl.pallas_call(
        _make_scores_softmax_kernel(rem),
        out_shape=jax.ShapeDtypeStruct((B, H, H), att_dtype),
        grid_spec=pltpu.PrefetchScalarGridSpec(
            num_scalar_prefetch=0,
            grid=(n_b, n_m),
            in_specs=[
                pl.BlockSpec((TB, H, TM), lambda b, k: (b, 0, k)),
                pl.BlockSpec((TB, H, TM), lambda b, k: (b, 0, k)),
            ],
            out_specs=pl.BlockSpec((TB, H, H), lambda b, k: (b, 0, 0)),
            scratch_shapes=[pltpu.VMEM((TB, H, H), jnp.float32)],
        ),
        compiler_params=pltpu.CompilerParams(
            dimension_semantics=("parallel", "arbitrary"),
            vmem_limit_bytes=vmem_limit,
        ),
    )(x_flat, xt_flat)

    out = pl.pallas_call(
        _apply_attention_kernel,
        out_shape=jax.ShapeDtypeStruct((B, H, M), out_dtype),
        grid_spec=pltpu.PrefetchScalarGridSpec(
            num_scalar_prefetch=0,
            grid=(n_b, n_m),
            in_specs=[
                pl.BlockSpec((TB, H, H), lambda b, m: (b, 0, 0)),
                pl.BlockSpec((TB, H, TM), lambda b, m: (b, 0, m)),
            ],
            out_specs=pl.BlockSpec((TB, H, TM), lambda b, m: (b, 0, m)),
        ),
        compiler_params=pltpu.CompilerParams(
            dimension_semantics=("parallel", "parallel"),
            vmem_limit_bytes=vmem_limit,
        ),
    )(att, g_flat)

    return out


def sa_coronal_block(x_, x_t, g_x, *, compute_dtype=None):
    """Pallas implementation of saCoronalBlock.forward.

    x_, x_t, g_x: (B, C, D, H, W); returns (B, C, D, H, W) in the input dtype.
    compute_dtype: optional narrower operand dtype (e.g. jnp.bfloat16) — halves HBM
    traffic on this bandwidth-bound kernel; the cast is fused into the wrapper
    transpose and accumulation stays f32. Default keeps the input dtype so numerics
    match the PyTorch module.
    """
    B, C, D, H, W = x_.shape
    M = D * C * W
    out_dtype = x_.dtype
    compute_dtype = compute_dtype if compute_dtype is not None else x_.dtype

    def flatten(t):
        # (B,C,D,H,W) -> (B,H,D,C,W) -> (B,H,M); one fused XLA transpose(+cast) pass.
        t = jnp.transpose(t, (0, 3, 2, 1, 4)).astype(compute_dtype)
        return t.reshape(B, H, M)

    out_flat = sa_coronal_block_flat(
        flatten(x_), flatten(x_t), flatten(g_x), out_dtype=out_dtype
    )

    out = out_flat.reshape(B, H, D, C, W)
    return jnp.transpose(out, (0, 3, 2, 1, 4))


def _reference(x_, x_t, g_x):
    """Pure-JAX reference mirroring the PyTorch code, for verification."""
    B, C, D, H, W = x_.shape
    xp = jnp.transpose(x_, (0, 3, 2, 1, 4)).reshape(B, H, -1)
    gp = jnp.transpose(g_x, (0, 3, 2, 1, 4)).reshape(B, H, -1)
    xtp = jnp.transpose(x_t, (0, 3, 2, 1, 4)).reshape(B, H, -1)
    att = jax.nn.softmax(jnp.einsum("bhm,bkm->bhk", xp, xtp), axis=-1)
    out = jnp.einsum("bhk,bkm->bhm", att, gp)
    out = out.reshape(B, H, D, C, W)
    return jnp.transpose(out, (0, 3, 2, 1, 4))


if __name__ == "__main__":
    # Shapes consistent with the module's 5-D (B, C, D, H, W) inputs.
    B, C, D, H, W = 2, 4, 8, 16, 8   # coronal_size = H = 16, M = D*C*W = 256
    key = jax.random.PRNGKey(0)
    k1, k2, k3 = jax.random.split(key, 3)
    x_ = jax.random.normal(k1, (B, C, D, H, W), dtype=jnp.float32)
    x_t = jax.random.normal(k2, (B, C, D, H, W), dtype=jnp.float32)
    g_x = jax.random.normal(k3, (B, C, D, H, W), dtype=jnp.float32)

    out = jax.block_until_ready(sa_coronal_block(x_, x_t, g_x))
    ref = jax.block_until_ready(_reference(x_, x_t, g_x))
    assert out.shape == (B, C, D, H, W)
    assert jnp.allclose(out, ref, atol=1e-3, rtol=1e-3), "mismatch vs reference"

    # Ragged-M shape (M = 60, not a multiple of 128): exercises the in-kernel mask path.
    B2, C2, D2, H2, W2 = 2, 3, 4, 8, 5
    j1, j2, j3 = jax.random.split(jax.random.PRNGKey(1), 3)
    xr = jax.random.normal(j1, (B2, C2, D2, H2, W2), dtype=jnp.float32)
    xtr = jax.random.normal(j2, (B2, C2, D2, H2, W2), dtype=jnp.float32)
    gr = jax.random.normal(j3, (B2, C2, D2, H2, W2), dtype=jnp.float32)
    out2 = jax.block_until_ready(sa_coronal_block(xr, xtr, gr))
    ref2 = jax.block_until_ready(_reference(xr, xtr, gr))
    assert jnp.allclose(out2, ref2, atol=1e-3, rtol=1e-3), "ragged-M mismatch vs reference"

    print("KERNEL_OK")
</pallas_src>

<mosaic_0001>
module attributes {stable_mosaic.version = 11 : i64} {
  func.func @kernel(%arg0: i32, %arg1: i32, %arg2: memref<1x16x256xf32, #tpu.memory_space<vmem>>, %arg3: memref<1x16x256xf32, #tpu.memory_space<vmem>>, %arg4: memref<1x16x16xf32, #tpu.memory_space<vmem>>, %arg5: memref<1x16x16xf32, #tpu.memory_space<vmem>>) attributes {dimension_semantics = [#tpu.dimension_semantics<parallel>, #tpu.dimension_semantics<arbitrary>], iteration_bounds = array<i64: 2, 1>, scalar_prefetch = 0 : i64, scratch_operands = 1 : i64, tpu.core_type = #tpu.core_type<tc>, window_params = [{transform_indices = @transform_0, window_bounds = array<i64: 1, 16, 256>}, {transform_indices = @transform_1, window_bounds = array<i64: 1, 16, 256>}, {transform_indices = @transform_2, window_bounds = array<i64: 1, 16, 16>}]} {
    %c0_i32 = arith.constant 0 : i32
    %0 = arith.cmpi eq, %arg1, %c0_i32 : i32
    %1 = arith.extui %0 : i1 to i32
    %c0_i32_0 = arith.constant 0 : i32
    %2 = arith.cmpi ne, %1, %c0_i32_0 : i32
    scf.if %2 {
      %cst_14 = arith.constant 0.000000e+00 : f32
      %12 = vector.broadcast %cst_14 : f32 to vector<1x16x16xf32>
      %c0_15 = arith.constant 0 : index
      %c0_16 = arith.constant 0 : index
      %c0_17 = arith.constant 0 : index
      %13 = vector.load %arg5[%c0_15, %c0_16, %c0_17] : memref<1x16x16xf32, #tpu.memory_space<vmem>>, vector<1x16x16xf32>
      tpu.vector_store %arg5[%c0_15, %c0_16, %c0_17], %12 {strides = array<i32>} : memref<1x16x16xf32, #tpu.memory_space<vmem>>, vector<1x16x16xf32>,
    } else {
    }
    %c0 = arith.constant 0 : index
    %c0_1 = arith.constant 0 : index
    %c0_2 = arith.constant 0 : index
    %3 = vector.load %arg2[%c0, %c0_1, %c0_2] : memref<1x16x256xf32, #tpu.memory_space<vmem>>, vector<1x16x256xf32>
    %c0_3 = arith.constant 0 : index
    %c0_4 = arith.constant 0 : index
    %c0_5 = arith.constant 0 : index
    %4 = vector.load %arg3[%c0_3, %c0_4, %c0_5] : memref<1x16x256xf32, #tpu.memory_space<vmem>>, vector<1x16x256xf32>
    %c0_6 = arith.constant 0 : index
    %c0_7 = arith.constant 0 : index
    %c0_8 = arith.constant 0 : index
    %5 = vector.load %arg5[%c0_6, %c0_7, %c0_8] : memref<1x16x16xf32, #tpu.memory_space<vmem>>, vector<1x16x16xf32>
    %cst = arith.constant dense<0.000000e+00> : vector<1x16x16xf32>
    %6 = tpu.matmul %3, %4, %cst {dimension_numbers = #tpu.dot_dimension_numbers<[2], [2], [1], [1], [0, 0, 0, 1, 1, 1], [0], [0]>} : vector<1x16x256xf32>, vector<1x16x256xf32>, vector<1x16x16xf32> -> vector<1x16x16xf32>
    %7 = arith.addf %5, %6 : vector<1x16x16xf32>
    %c0_9 = arith.constant 0 : index
    %c0_10 = arith.constant 0 : index
    %c0_11 = arith.constant 0 : index
    %8 = vector.load %arg5[%c0_9, %c0_10, %c0_11] : memref<1x16x16xf32, #tpu.memory_space<vmem>>, vector<1x16x16xf32>
    tpu.vector_store %arg5[%c0_9, %c0_10, %c0_11], %7 {strides = array<i32>} : memref<1x16x16xf32, #tpu.memory_space<vmem>>, vector<1x16x16xf32>,
    %c0_i32_12 = arith.constant 0 : i32
    %9 = arith.cmpi eq, %arg1, %c0_i32_12 : i32
    %10 = arith.extui %9 : i1 to i32
    %c0_i32_13 = arith.constant 0 : i32
    %11 = arith.cmpi ne, %10, %c0_i32_13 : i32
    scf.if %11 {
      %c0_14 = arith.constant 0 : index
      %c0_15 = arith.constant 0 : index
      %c0_16 = arith.constant 0 : index
      %12 = vector.load %arg5[%c0_14, %c0_15, %c0_16] : memref<1x16x16xf32, #tpu.memory_space<vmem>>, vector<1x16x16xf32>
      %cst_17 = arith.constant dense<0xFF800000> : vector<1x16xf32>
      %13 = vector.multi_reduction <maximumf>, %12, %cst_17 [2] : vector<1x16x16xf32> to vector<1x16xf32>
      %14 = vector.shape_cast %13 : vector<1x16xf32> to vector<1x16x1xf32>
      %15 = vector.broadcast %14 : vector<1x16x1xf32> to vector<1x16x16xf32>
      %16 = arith.subf %12, %15 : vector<1x16x16xf32>
      %17 = math.exp %16 : vector<1x16x16xf32>
      %cst_18 = arith.constant dense<0.000000e+00> : vector<1x16xf32>
      %18 = vector.multi_reduction <add>, %17, %cst_18 [2] : vector<1x16x16xf32> to vector<1x16xf32>
      %19 = vector.shape_cast %18 : vector<1x16xf32> to vector<1x16x1xf32>
      %20 = vector.broadcast %19 : vector<1x16x1xf32> to vector<1x16x16xf32>
      %21 = arith.divf %17, %20 : vector<1x16x16xf32>
      %c0_19 = arith.constant 0 : index
      %c0_20 = arith.constant 0 : index
      %c0_21 = arith.constant 0 : index
      %22 = vector.load %arg4[%c0_19, %c0_20, %c0_21] : memref<1x16x16xf32, #tpu.memory_space<vmem>>, vector<1x16x16xf32>
      tpu.vector_store %arg4[%c0_19, %c0_20, %c0_21], %21 {strides = array<i32>} : memref<1x16x16xf32, #tpu.memory_space<vmem>>, vector<1x16x16xf32>,
    } else {
    }
    return
  }
  func.func @transform_0(%arg0: i32, %arg1: i32) -> (i32, i32, i32) {
    %c0_i32 = arith.constant 0 : i32
    %c0_i32_0 = arith.constant 0 : i32
    return %arg0, %c0_i32, %arg1 : i32, i32, i32
  }
  func.func @transform_1(%arg0: i32, %arg1: i32) -> (i32, i32, i32) {
    %c0_i32 = arith.constant 0 : i32
    %c0_i32_0 = arith.constant 0 : i32
    return %arg0, %c0_i32, %arg1 : i32, i32, i32
  }
  func.func @transform_2(%arg0: i32, %arg1: i32) -> (i32, i32, i32) {
    %c0_i32 = arith.constant 0 : i32
    %c0_i32_0 = arith.constant 0 : i32
    %c0_i32_1 = arith.constant 0 : i32
    return %arg0, %c0_i32, %c0_i32_0 : i32, i32, i32
  }
}

</mosaic_0001>

<llo_original>
// kernel: tpu_custom_call.1
$region0: #{tpu_custom_call.1}
  #allocation0 [shape = 'u32[]', space=smem, size = 0x4, offset = 0x4, fixed_abs, tag = 'smem constant byte address 0x4 - core index']
  #allocation1 [shape = 'u32[144,128]{1,0:T(1,128)}', space=vmem, size = 0x12000, scoped, tag = 'internal scratch']
  #allocation2 [shape = 'f32[1,16,16]{2,1,0:T(8,128)}', space=vmem, size = 0x2000, scoped, tag = 'scratch operand']
  %s0 = inlined_call_operand.hbm [shape: f32[2,16,256], index: 0, kind: input, shape index: {}]
  %s1 = inlined_call_operand.hbm [shape: f32[2,16,256], index: 1, kind: input, shape index: {}]
  %s2 = inlined_call_operand.hbm [shape: f32[2,16,16], index: 2, kind: output, shape index: {}]
  %s3 = sld [smem:[#allocation0]]
  $region57: #{tpu_custom_call.1} parent=0
    _
  %s5 = ssub.s32 1, %s3
  %s6 = scalar_select 0, %s5, %s3
  $region1: #{tpu_custom_call.1} parent=0
    #allocation3 [shape = 'u8[32768]{0}', space=vmem, size = 0x8000, scoped, tag = 'input window, operand 0']
    #allocation4 [shape = 's32[2]{0}', space=sflag, size = 0x8, scoped, tag = 'scoped memory for tpu_custom_call.1']
    #allocation5 [shape = 's32[2]{0}', space=sflag, size = 0x8, scoped, tag = 'scoped memory for tpu_custom_call.1']
    #allocation6 [shape = 'u8[32768]{0}', space=vmem, size = 0x8000, scoped, tag = 'input window, operand 1']
    #allocation7 [shape = 's32[2]{0}', space=sflag, size = 0x8, scoped, tag = 'scoped memory for tpu_custom_call.1']
    #allocation8 [shape = 'u8[16384]{0}', space=vmem, size = 0x4000, scoped, tag = 'output window, operand 0']
    %7 = vsyncpa [#allocation4], 0
    %s8 = scalar_lea.sflag [#allocation4], 1
    %9 = vsyncpa %s8, 0
    %10 = vsyncpa [#allocation7], 0
    %s11 = scalar_lea.sflag [#allocation7], 1
    %12 = vsyncpa %s11, 0
    %13 = vsyncpa [#allocation5], 0
    %s14 = scalar_lea.sflag [#allocation5], 1
    %15 = vsyncpa %s14, 0
    loop: start=0, step=1, limit=4
    $region2: #{tpu_custom_call.1} parent=1 // loop_pre_header
      _
    $region3: #{tpu_custom_call.1} parent=1 // loop_header
      %s17 = sphi 0, %s21
      %p18 = scmp.ge.s32.totalorder %s17, 4
      %s24 = sphi 0, %s36
      %s25 = sphi 0, %s32
      %s26 = sphi 0, %s24
      %s27 = sphi 0, %s25
      %s28 = sphi 0, %s26
      %s29 = sphi 0, %s27
      %s41 = sphi 0, %s43
      %s44 = sphi 0, %s41
      %s45 = sphi 0, %s44
      %s61 = sphi 0, %s45
      %s69 = sphi 0, %s71
      %s72 = sphi 0, %s69
      %s73 = sphi 0, %s72
      %s89 = sphi 0, %s73
      %s95 = sphi 0, %s97
      %s98 = sphi 0, %s95
      %s99 = sphi 0, %s98
      %s115 = sphi 0, %s99
    $region4: #{tpu_custom_call.1} parent=1 // loop_header_branch
      %20 = sbr.rel (%p18) target = $region8
    $region5: #{tpu_custom_call.1} parent=1 // loop_body
      %s22 = ssub.s32 %s17, 1
      %s23 = ssub.s32 %s17, 2
      %s30 = sadd.s32 1, %s25
      %p31 = scmp.ge.s32.totalorder %s30, 1
      %s32 = scalar_select %p31, 0, %s30
      %s33 = sadd.s32 1, %s24
      %s34 = scalar_select %p31, %s33, %s24
      %p35 = scmp.ge.s32.totalorder %s34, 2
      %s36 = scalar_select %p35, 0, %s34
      %s37 = ssub.s32 %s24, %s36
      %s38 = ssub.s32 %s25, %s32
      %s39 = sor.u32 %s37, %s38
      %p40 = scmp.eq.s32.totalorder %s39, 0
      %s42 = sadd.s32 %s41, 1
      %s43 = scalar_select %p40, %s41, %s42
      %p46 = pneg %p40
      %p47 = scmp.eq.s32.totalorder %s17, 1
      %p48 = por %p46, %p47
      %p49 = scmp.ne.s32.totalorder %s41, %s44
      %p50 = scmp.eq.s32.totalorder %s17, 0
      %p51 = por %p49, %p50
      %p52 = scmp.ne.s32.totalorder %s41, %s44
      %p53 = scmp.eq.s32.totalorder %s22, 1
      %p54 = por %p52, %p53
      %p55 = scmp.ne.s32.totalorder %s44, %s45
      %p56 = scmp.eq.s32.totalorder %s22, 0
      %p57 = por %p55, %p56
      %p58 = scmp.ne.s32.totalorder %s44, %s45
      %p59 = scmp.eq.s32.totalorder %s23, 1
      %p60 = por %p58, %p59
      %p62 = scmp.ne.s32.totalorder %s45, %s61
      %p63 = scmp.eq.s32.totalorder %s23, 0
      %p64 = por %p62, %p63
      %s65 = ssub.s32 %s24, %s36
      %s66 = ssub.s32 %s25, %s32
      %s67 = sor.u32 %s65, %s66
      %p68 = scmp.eq.s32.totalorder %s67, 0
      %s70 = sadd.s32 %s69, 1
      %s71 = scalar_select %p68, %s69, %s70
      %p74 = pneg %p68
      %p75 = scmp.eq.s32.totalorder %s17, 1
      %p76 = por %p74, %p75
      %p77 = scmp.ne.s32.totalorder %s69, %s72
      %p78 = scmp.eq.s32.totalorder %s17, 0
      %p79 = por %p77, %p78
      %p80 = scmp.ne.s32.totalorder %s69, %s72
      %p81 = scmp.eq.s32.totalorder %s22, 1
      %p82 = por %p80, %p81
      %p83 = scmp.ne.s32.totalorder %s72, %s73
      %p84 = scmp.eq.s32.totalorder %s22, 0
      %p85 = por %p83, %p84
      %p86 = scmp.ne.s32.totalorder %s72, %s73
      %p87 = scmp.eq.s32.totalorder %s23, 1
      %p88 = por %p86, %p87
      %p90 = scmp.ne.s32.totalorder %s73, %s89
      %p91 = scmp.eq.s32.totalorder %s23, 0
      %p92 = por %p90, %p91
      %s93 = ssub.s32 %s24, %s36
      %p94 = scmp.eq.s32.totalorder %s93, 0
      %s96 = sadd.s32 %s95, 1
      %s97 = scalar_select %p94, %s95, %s96
      %p100 = pneg %p94
      %p101 = scmp.eq.s32.totalorder %s17, 1
      %p102 = por %p100, %p101
      %p103 = scmp.ne.s32.totalorder %s95, %s98
      %p104 = scmp.eq.s32.totalorder %s17, 0
      %p105 = por %p103, %p104
      %p106 = scmp.ne.s32.totalorder %s95, %s98
      %p107 = scmp.eq.s32.totalorder %s22, 1
      %p108 = por %p106, %p107
      %p109 = scmp.ne.s32.totalorder %s98, %s99
      %p110 = scmp.eq.s32.totalorder %s22, 0
      %p111 = por %p109, %p110
      %p112 = scmp.ne.s32.totalorder %s98, %s99
      %p113 = scmp.eq.s32.totalorder %s23, 1
      %p114 = por %p112, %p113
      %p116 = scmp.ne.s32.totalorder %s99, %s115
      %p117 = scmp.eq.s32.totalorder %s23, 0
      %p118 = por %p116, %p117
      %p119 = scmp.le.s32.totalorder 1, %s17
      %p120 = scmp.lt.s32.totalorder %s17, 3
      %p121 = pnand %p119, %p120
      %p122 = pneg %p121
      // Predicated region
      $region9: #{tpu_custom_call.1} parent=5 // pred_check
        _
      $region10: #{tpu_custom_call.1} parent=5 // pred_check_branch
        %124 = sbr.rel (%p121) target = $region12
      $region11: #{tpu_custom_call.1} parent=5 // pred_region
        %s125 = ssub.s32 %s17, 1
      $region12: #{tpu_custom_call.1} parent=5 // pred_fallthru
        _
      %p126 = scmp.lt.s32.totalorder %s17, 2
      // Predicated region
      $region13: #{tpu_custom_call.1} parent=5 // pred_check
        %p127 = pneg %p126
      $region14: #{tpu_custom_call.1} parent=5 // pred_check_branch
        %129 = sbr.rel (%p127) target = $region16
      $region15: #{tpu_custom_call.1} parent=5 // pred_region
        // Predicated region
        $region17: #{tpu_custom_call.1} parent=15 // pred_check
          %p130 = pneg %p51
        $region18: #{tpu_custom_call.1} parent=15 // pred_check_branch
          %132 = sbr.rel (%p130) target = $region20
        $region19: #{tpu_custom_call.1} parent=15 // pred_region
          %s133 = sand.u32 %s41, 1
          %s134 = scalar_lea.sflag [#allocation4], %s133
          %s135 = sand.u32 %s41, 1
          %s136 = smul.addr %s135, 32
          %s137 = scalar_lea.vmem [#allocation3], %s136
          %s138 = smul.u32 2, %s25
          %s140 = ssub.s32 512, 512
          %141 = vsyncadd %s134, %s140
          %s142 = smul.addr %s24, 4
          %s143 = sadd.s32 %s138, %s142
          %s144 = smul.addr %s143, 128
          %s145 = scalar_lea.hbm %s0, %s144
          %s146 = sshll.u32 %s137, 4
          %s147 = int_to_ptr.vmem [resolvable:$true] %s146
          %152 = dma.hbm_to_vmem [thread:$0]  %s145, 512, %s147, %s134, 256, 256, 16
        $region20: #{tpu_custom_call.1} parent=15 // pred_fallthru
          _
        // Predicated region
        $region21: #{tpu_custom_call.1} parent=15 // pred_check
          %p153 = pneg %p79
        $region22: #{tpu_custom_call.1} parent=15 // pred_check_branch
          %155 = sbr.rel (%p153) target = $region24
        $region23: #{tpu_custom_call.1} parent=15 // pred_region
          %s156 = sand.u32 %s69, 1
          %s157 = scalar_lea.sflag [#allocation7], %s156
          %s158 = sand.u32 %s69, 1
          %s159 = smul.addr %s158, 32
          %s160 = scalar_lea.vmem [#allocation6], %s159
          %s161 = smul.u32 2, %s25
          %s163 = ssub.s32 512, 512
          %164 = vsyncadd %s157, %s163
          %s165 = smul.addr %s24, 4
          %s166 = sadd.s32 %s161, %s165
          %s167 = smul.addr %s166, 128
          %s168 = scalar_lea.hbm %s1, %s167
          %s169 = sshll.u32 %s160, 4
          %s170 = int_to_ptr.vmem [resolvable:$true] %s169
          %175 = dma.hbm_to_vmem [thread:$0]  %s168, 512, %s170, %s157, 256, 256, 16
        $region24: #{tpu_custom_call.1} parent=15 // pred_fallthru
          _
      $region16: #{tpu_custom_call.1} parent=5 // pred_fallthru
        _
      %p176 = scmp.le.s32.totalorder 1, %s17
      %p177 = scmp.lt.s32.totalorder %s17, 3
      %p178 = pnand %p176, %p177
      %p179 = pneg %p178
      // Predicated region
      $region25: #{tpu_custom_call.1} parent=5 // pred_check
        _
      $region26: #{tpu_custom_call.1} parent=5 // pred_check_branch
        %181 = sbr.rel (%p178) target = $region28
      $region27: #{tpu_custom_call.1} parent=5 // pred_region
        %s182 = ssub.s32 %s17, 1
        %s183 = sand.u32 %s44, 1
        %s184 = scalar_lea.sflag [#allocation4], %s183
        %s185 = sand.u32 %s44, 1
        %s186 = smul.addr %s185, 32
        %s187 = scalar_lea.vmem [#allocation3], %s186
        // Predicated region
        $region29: #{tpu_custom_call.1} parent=27 // pred_check
          %p188 = pneg %p57
        $region30: #{tpu_custom_call.1} parent=27 // pred_check_branch
          %190 = sbr.rel (%p188) target = $region32
        $region31: #{tpu_custom_call.1} parent=27 // pred_region
          %191 = dma.done %s184, 512
        $region32: #{tpu_custom_call.1} parent=27 // pred_fallthru
          _
        %s192 = sand.u32 %s72, 1
        %s193 = scalar_lea.sflag [#allocation7], %s192
        %s194 = sand.u32 %s72, 1
        %s195 = smul.addr %s194, 32
        %s196 = scalar_lea.vmem [#allocation6], %s195
        // Predicated region
        $region33: #{tpu_custom_call.1} parent=27 // pred_check
          %p197 = pneg %p85
        $region34: #{tpu_custom_call.1} parent=27 // pred_check_branch
          %199 = sbr.rel (%p197) target = $region36
        $region35: #{tpu_custom_call.1} parent=27 // pred_region
          %200 = dma.done %s193, 512
        $region36: #{tpu_custom_call.1} parent=27 // pred_fallthru
          _
        %s201 = sand.u32 %s44, 1
        %s202 = scalar_lea.sflag [#allocation4], %s201
        %s203 = sand.u32 %s44, 1
        %s204 = smul.addr %s203, 32
        %s205 = scalar_lea.vmem [#allocation3], %s204
        %p206 = pneg %p57
        %p207 = pneg %p54
        %s208 = sand.u32 %s72, 1
        %s209 = scalar_lea.sflag [#allocation7], %s208
        %s210 = sand.u32 %s72, 1
        %s211 = smul.addr %s210, 32
        %s212 = scalar_lea.vmem [#allocation6], %s211
        %p213 = pneg %p85
        %p214 = pneg %p82
        %p215 = pneg %p111
        %p216 = pneg %p108
        %s217 = sand.u32 %s98, 1
        %s218 = scalar_lea.sflag [#allocation5], %s217
        %s219 = sand.u32 %s98, 1
        %s220 = smul.addr %s219, 16
        %s221 = scalar_lea.vmem [#allocation8], %s220
        %s222 = smul.u32 2, %s27
        %s223 = smul.u32 2, %s27
        %p224 = scmp.eq.s32.totalorder %s27, 0
        // Predicated region
        $region37: #{tpu_custom_call.1} parent=27 // pred_check
          %p225 = pneg %p224
        $region38: #{tpu_custom_call.1} parent=27 // pred_check_branch
          %227 = sbr.rel (%p225) target = $region40
        $region39: #{tpu_custom_call.1} parent=27 // pred_region
          %vm228 = vcmask 130048
          %229 = vst.msk [vmem:[#allocation2] sm:$0xff] %vm228, 0.0
          %230 = vst.msk [vmem:[#allocation2 + $0x8] sm:$0xff] %vm228, 0.0
        $region40: #{tpu_custom_call.1} parent=27 // pred_fallthru
          _
        %v231 = vld [vmem:[%s187] sm:$0xff]
        %v232 = vld [vmem:[%s187 + $0x8] sm:$0xff]
        %v233 = vld [vmem:[%s187 + $0x10] sm:$0xff]
        %v234 = vld [vmem:[%s187 + $0x18] sm:$0xff]
        %v235 = vld [vmem:[%s196] sm:$0xff]
        %v236 = vld [vmem:[%s196 + $0x8] sm:$0xff]
        %v237 = vld [vmem:[%s196 + $0x10] sm:$0xff]
        %v238 = vld [vmem:[%s196 + $0x18] sm:$0xff]
        %v239 = vld [vmem:[#allocation2] sm:$0xff]
        %v240 = vld [vmem:[#allocation2 + $0x8] sm:$0xff]
        %241 = vmatprep.subr.mxu0 %v236
        %242 = vmatpush1.xpose.msra.mxu0 %v235
        %243 = vmatprep.subr.mxu0 %v238
        %244 = vmatpush1.xpose.msra.mxu0 %v237
        %245 = vmatprep.subr.mxu0 0.0
        %246 = vmatpush1.xpose.msra.mxu0 0.0
        %247 = vmatprep.subr.mxu0 0.0
        %248 = vmatpush1.xpose.msra.mxu0 0.0
        %249 = vmatprep.subr.mxu0 0.0
        %250 = vmatpush1.xpose.msra.mxu0 0.0
        %251 = vmatprep.subr.mxu0 0.0
        %252 = vmatpush1.xpose.msra.mxu0 0.0
        %253 = vmatprep.subr.mxu0 0.0
        %254 = vmatpush1.xpose.msra.mxu0 0.0
        %255 = vmatprep.subr.mxu0 0.0
        %256 = vmatpush1.xpose.msra.mxu0 0.0
        %257 = vmatprep.subr.mxu0 0.0
        %258 = vmatpush1.xpose.msra.mxu0 0.0
        %259 = vmatprep.subr.mxu0 0.0
        %260 = vmatpush1.xpose.msra.mxu0 0.0
        %261 = vmatprep.subr.mxu0 0.0
        %262 = vmatpush1.xpose.msra.mxu0 0.0
        %263 = vmatprep.subr.mxu0 0.0
        %264 = vmatpush1.xpose.msra.mxu0 0.0
        %265 = vmatprep.subr.mxu0 0.0
        %266 = vmatpush1.xpose.msra.mxu0 0.0
        %267 = vmatprep.subr.mxu0 0.0
        %268 = vmatpush1.xpose.msra.mxu0 0.0
        %269 = vmatprep.subr.mxu0 0.0
        %270 = vmatpush1.xpose.msra.mxu0 0.0
        %271 = vmatprep.subr.mxu0 0.0
        %272 = vmatpush1.xpose.msra.mxu0 0.0
        %273 = vmatprep.subr.mxu0 0.0
        %274 = vmatpush1.xpose.msra.mxu0 0.0
        %275 = vmatprep.subr.mxu0 0.0
        %276 = vmatpush1.xpose.msra.mxu0 0.0
        %277 = vmatprep.subr.mxu0 0.0
        %278 = vmatpush1.xpose.msra.mxu0 0.0
        %279 = vmatprep.subr.mxu0 0.0
        %280 = vmatpush1.xpose.msra.mxu0 0.0
        %281 = vmatprep.subr.mxu0 0.0
        %282 = vmatpush1.xpose.msra.mxu0 0.0
        %283 = vmatprep.subr.mxu0 0.0
        %284 = vmatpush1.xpose.msra.mxu0 0.0
        %285 = vmatprep.subr.mxu0 0.0
        %286 = vmatpush1.xpose.msra.mxu0 0.0
        %287 = vmatprep.subr.mxu0 0.0
        %288 = vmatpush1.xpose.msra.mxu0 0.0
        %289 = vmatprep.subr.mxu0 0.0
        %290 = vmatpush1.xpose.msra.mxu0 0.0
        %291 = vmatprep.subr.mxu0 0.0
        %292 = vmatpush1.xpose.msra.mxu0 0.0
        %293 = vmatprep.subr.mxu0 0.0
        %294 = vmatpush1.xpose.msra.mxu0 0.0
        %295 = vmatprep.subr.mxu0 0.0
        %296 = vmatpush1.xpose.msra.mxu0 0.0
        %297 = vmatprep.subr.mxu0 0.0
        %298 = vmatpush1.xpose.msra.mxu0 0.0
        %299 = vmatprep.subr.mxu0 0.0
        %300 = vmatpush1.xpose.msra.mxu0 0.0
        %301 = vmatprep.subr.mxu0 0.0
        %302 = vmatpush1.xpose.msra.mxu0 0.0
        %303 = vmatprep.subr.mxu0 0.0
        %304 = vmatpush1.xpose.msra.mxu0 0.0
        %305 = vmatprep.mubr.f32.mxu0 %v232
        %306 = vmatmul.mubr.f32.gmra.mrb[0].mxu0 %v231
        %v307 = vpop.f32.mrb[0].mxu0
        %v308 = vadd.f32 0.0, %v307
        %v309 = vpop.f32.mrb[0].mxu0
        %310 = vmatprep.mubr.f32.mxu0 %v234
        %311 = vmatmul.mubr.f32.gmra.mrb[0].mxu0 %v233
        %v312 = vpop.f32.mrb[0].mxu0
        %v313 = vadd.f32 0.0, %v312
        %v314 = vpop.f32.mrb[0].mxu0
        %315 = vdwg.mxu0
        %v316 = vadd.f32 %v239, %v308
        %v317 = vadd.f32 %v240, %v313
        %vm318 = vcmask 130048
        %319 = vst.msk [vmem:[#allocation2] sm:$0xff] %vm318, %v316
        %320 = vst.msk [vmem:[#allocation2 + $0x8] sm:$0xff] %vm318, %v317
        // Predicated region
        $region41: #{tpu_custom_call.1} parent=27 // pred_check
          %p321 = pneg %p224
        $region42: #{tpu_custom_call.1} parent=27 // pred_check_branch
          %323 = sbr.rel (%p321) target = $region44
        $region43: #{tpu_custom_call.1} parent=27 // pred_region
          %v324 = vld [vmem:[#allocation2] sm:$0xff]
          %v325 = vld [vmem:[#allocation2 + $0x8] sm:$0xff]
          %v326 = vsel %vm318, %v324, -inf
          %327 = vmax.xlane.f32.xlu0 %v326
          %v328 = vpop.xlane.xlu0 %327
          %v329 = vsel %vm318, %v325, -inf
          %330 = vmax.xlane.f32.xlu0 %v329
          %v331 = vpop.xlane.xlu0 %330
          %v332 = vsub.f32 %v324, %v328
          %v333 = vsub.f32 %v325, %v331
          %v334 = vmul.f32 %v332, 1.442695
          %v335 = vpow.pop %v334
          %v336 = vmul.f32 %v333, 1.442695
          %v337 = vpow.pop %v336
          %v338 = vsel %vm318, %v335, 0.0
          %339 = vadd.xlane.f32.xlu0 %v338
          %v340 = vpop.xlane.xlu0 %339
          %v341 = vsel %vm318, %v337, 0.0
          %342 = vadd.xlane.f32.xlu0 %v341
          %v343 = vpop.xlane.xlu0 %342
          %v344 = vrcp.pop %v340
          %v345 = vmul.f32 %v335, %v344
          %v346 = vrcp.pop %v343
          %v347 = vmul.f32 %v337, %v346
          %348 = vst.msk [vmem:[%s221] sm:$0xff] %vm318, %v345
          %349 = vst.msk [vmem:[%s221 + $0x8] sm:$0xff] %vm318, %v347
        $region44: #{tpu_custom_call.1} parent=27 // pred_fallthru
          _
        %s350 = sand.u32 %s98, 1
        %s351 = scalar_lea.sflag [#allocation5], %s350
        %s352 = sand.u32 %s98, 1
        %s353 = smul.addr %s352, 16
        %s354 = scalar_lea.vmem [#allocation8], %s353
        // Predicated region
        $region45: #{tpu_custom_call.1} parent=27 // pred_check
          %p355 = pneg %p108
        $region46: #{tpu_custom_call.1} parent=27 // pred_check_branch
          %357 = sbr.rel (%p355) target = $region48
        $region47: #{tpu_custom_call.1} parent=27 // pred_region
          %s359 = ssub.s32 256, 256
          %360 = vsyncadd %s351, %s359
          %s361 = smul.addr %s26, 2
          %s362 = smul.addr %s361, 128
          %s363 = scalar_lea.hbm %s2, %s362
          %s364 = sshll.u32 %s354, 4
          %s365 = int_to_ptr.vmem [resolvable:$true] %s364
          %370 = dma.vmem_to_hbm [thread:$0]  %s365, 256, %s363, %s351, 128, 128, 8
        $region48: #{tpu_custom_call.1} parent=27 // pred_fallthru
          _
      $region28: #{tpu_custom_call.1} parent=5 // pred_fallthru
        _
      %p371 = scmp.le.s32.totalorder 2, %s17
      // Predicated region
      $region49: #{tpu_custom_call.1} parent=5 // pred_check
        %p372 = pneg %p371
      $region50: #{tpu_custom_call.1} parent=5 // pred_check_branch
        %374 = sbr.rel (%p372) target = $region52
      $region51: #{tpu_custom_call.1} parent=5 // pred_region
        %s375 = ssub.s32 %s17, 2
        // Predicated region
        $region53: #{tpu_custom_call.1} parent=51 // pred_check
          %p376 = pneg %p114
        $region54: #{tpu_custom_call.1} parent=51 // pred_check_branch
          %378 = sbr.rel (%p376) target = $region56
        $region55: #{tpu_custom_call.1} parent=51 // pred_region
          %s379 = sand.u32 %s99, 1
          %s380 = scalar_lea.sflag [#allocation5], %s379
          %s381 = sand.u32 %s99, 1
          %s382 = smul.addr %s381, 16
          %s383 = scalar_lea.vmem [#allocation8], %s382
          %384 = dma.done %s380, 256
        $region56: #{tpu_custom_call.1} parent=51 // pred_fallthru
          _
      $region52: #{tpu_custom_call.1} parent=5 // pred_fallthru
        _
    $region6: #{tpu_custom_call.1} parent=1 // loop_footer
      %s21 = sadd.s32 1, %s17
    $region7: #{tpu_custom_call.1} parent=1 // loop_footer_branch
      %16 = sbr.rel target = $region3
    $region8: #{tpu_custom_call.1} parent=1 // loop_exit
      _
    %385 = vsyncpa [#allocation4], 1
    %s386 = scalar_lea.sflag [#allocation4], 1
    %387 = vsyncpa %s386, 1
    %388 = vsyncpa [#allocation7], 1
    %s389 = scalar_lea.sflag [#allocation7], 1
    %390 = vsyncpa %s389, 1
    %391 = vsyncpa [#allocation5], 1
    %s392 = scalar_lea.sflag [#allocation5], 1
    %393 = vsyncpa %s392, 1

</llo_original>
